<compile_context>
chip_gen: v6e
topology: v6e:2x2x1
jax: 0.10.0
libtpu: 0.0.40
codegen_flags: <defaults>
</compile_context>

<pallas_src>
import functools
import math

import jax
import jax.numpy as jnp
from jax.experimental import pallas as pl
from jax.experimental.pallas import tpu as pltpu

LANE = 128        # vreg lane width
SUBLANE = 8       # f32 sublane count
MAX_TILE_B = 512  # batch tile: multiple of 128 MXU rows, comfortably inside VMEM
                  # on v5e/v6e (32 MiB scoped) and v7x (64 MiB physical)


def _round_up(n, m):
    return -(-n // m) * m


# ---------------------------------------------------------------------------
# Fused kernel: [enc0|enc1] (block-diag)  ->  [dec1|dec0] (block-diag)
# ---------------------------------------------------------------------------
def _ce_fused_kernel(x_ref, w_ref, b_ref, o_ref, *, d_in, r1):
    """One batch tile of the full CEModel forward (dataset != 1 branch).

    x_ref : (TILE_B, d_in) f32      [c0 | c1]              (streamed per grid step)
    w_ref : (r1 + 5*128, 128) f32   6 stacked weight segs  (VMEM-resident)
    b_ref : (6, 128) f32            per-layer bias rows    (VMEM-resident)
    o_ref : (2, TILE_B, 128) f32    [0]=x1 slab, [1]=y slab (lane-dense stores)
    """
    x = x_ref[...]
    o2 = r1
    o3 = o2 + LANE
    o4 = o3 + LANE
    o5 = o4 + LANE
    o6 = o5 + LANE

    def lin(h, w, b):
        return jnp.dot(h, w, preferred_element_type=jnp.float32) + b

    # encoder stage: Linear -> ReLU -> Linear -> ReLU -> Linear (dropout p=0 elided)
    h = jnp.maximum(lin(x, w_ref[0:d_in, :], b_ref[0, :]), 0.0)          # (TILE_B,128)
    h = jnp.maximum(lin(h, w_ref[o2:o2 + LANE, :], b_ref[1, :]), 0.0)
    x1 = lin(h, w_ref[o3:o3 + LANE, :], b_ref[2, :])                     # [x1_0|x1_1|0..]
    # decoder stage (block order dec1|dec0: dec1 reads x1_0, dec0 reads x1_1)
    g = jnp.maximum(lin(x1, w_ref[o4:o4 + LANE, :], b_ref[3, :]), 0.0)
    g = jnp.maximum(lin(g, w_ref[o5:o5 + LANE, :], b_ref[4, :]), 0.0)
    y = lin(g, w_ref[o6:o6 + LANE, :], b_ref[5, :])                      # [y1|y0|0..]

    # lane-dense, tile-aligned stores
    o_ref[0, :, :] = x1
    o_ref[1, :, :] = y


def _ce_fused_call(xin, w_slab, b_slab, *, d_in, r1, tile_b):
    """xin: (B_pad, d_in) f32 with B_pad % tile_b == 0."""
    b_pad = xin.shape[0]
    grid = (b_pad // tile_b,)
    flops = 2 * b_pad * (d_in * LANE + 5 * LANE * LANE)
    bytes_accessed = 4 * (int(xin.size) + int(w_slab.size) + int(b_slab.size)
                          + 2 * b_pad * LANE)
    kernel = functools.partial(_ce_fused_kernel, d_in=d_in, r1=r1)
    return pl.pallas_call(
        kernel,
        out_shape=jax.ShapeDtypeStruct((2, b_pad, LANE), jnp.float32),
        grid=grid,
        in_specs=[
            pl.BlockSpec((tile_b, d_in), lambda i: (i, 0)),   # streamed batch tile
            pl.BlockSpec(w_slab.shape, lambda i: (0, 0)),     # weights stay VMEM-resident
            pl.BlockSpec(b_slab.shape, lambda i: (0, 0)),     # biases stay VMEM-resident
        ],
        out_specs=pl.BlockSpec((2, tile_b, LANE), lambda i: (0, i, 0)),
        compiler_params=pltpu.CompilerParams(
            dimension_semantics=("parallel",)),               # both TCs on v7x
        cost_estimate=pl.CostEstimate(flops=flops, transcendentals=0,
                                      bytes_accessed=bytes_accessed),
    )(xin, w_slab, b_slab)


# ---------------------------------------------------------------------------
# Deterministic parameter construction (PyTorch nn.Linear-style init),
# weights stored pre-transposed as [in_features, out_features].
# ---------------------------------------------------------------------------
def _linear_params(key, fan_in, fan_out):
    kw, kb = jax.random.split(key)
    bound = 1.0 / math.sqrt(fan_in)
    w = jax.random.uniform(kw, (fan_in, fan_out), jnp.float32, -bound, bound)
    b = jax.random.uniform(kb, (fan_out,), jnp.float32, -bound, bound)
    return w, b


def make_ce_params(key, i_shape, o_dim, mid=32, mid2=32):
    keys = jax.random.split(key, 12)
    i0, i1 = i_shape
    return {
        # enc_model(i): one(i->mid), sec(mid->mid), thr(mid->o_dim)
        "enc0": [_linear_params(keys[0], i0, mid),
                 _linear_params(keys[1], mid, mid),
                 _linear_params(keys[2], mid, o_dim)],
        "enc1": [_linear_params(keys[3], i1, mid),
                 _linear_params(keys[4], mid, mid),
                 _linear_params(keys[5], mid, o_dim)],
        # dec_model(i): de1(o_dim->mid), de2(mid->mid2), de3(mid2->i)
        "dec0": [_linear_params(keys[6], o_dim, mid),
                 _linear_params(keys[7], mid, mid2),
                 _linear_params(keys[8], mid2, i0)],
        "dec1": [_linear_params(keys[9], o_dim, mid),
                 _linear_params(keys[10], mid, mid2),
                 _linear_params(keys[11], mid2, i1)],
    }


# ---------------------------------------------------------------------------
# One-time packing: block-diagonal twins + coalescing into two VMEM slabs.
# ---------------------------------------------------------------------------
def _block_diag(a, b):
    m, n = a.shape
    p, q = b.shape
    out = jnp.zeros((m + p, n + q), jnp.float32)
    out = out.at[:m, :n].set(a)
    out = out.at[m:, n:].set(b)
    return out


def _segment(block, rows):
    """Place `block` into the top-left corner of a (rows, LANE) zero segment."""
    m, n = block.shape
    return jnp.zeros((rows, LANE), jnp.float32).at[:m, :n].set(block)


def _bias_row(a, b):
    v = jnp.concatenate([a, b])
    return jnp.pad(v, (0, LANE - v.shape[0]))


def pack_ce_params(params, i_shape, o_dim):
    i0, i1 = i_shape
    d_in = i0 + i1
    r1 = _round_up(d_in, SUBLANE)
    (w1e0, b1e0), (w2e0, b2e0), (w3e0, b3e0) = params["enc0"]
    (w1e1, b1e1), (w2e1, b2e1), (w3e1, b3e1) = params["enc1"]
    (w1d0, b1d0), (w2d0, b2d0), (w3d0, b3d0) = params["dec0"]
    (w1d1, b1d1), (w2d1, b2d1), (w3d1, b3d1) = params["dec1"]

    hid = w1e0.shape[1] + w1e1.shape[1]                 # 2*mid = 64
    assert d_in <= LANE and hid <= LANE and 2 * o_dim <= LANE

    w_slab = jnp.concatenate([
        _segment(_block_diag(w1e0, w1e1), r1),          # enc L1: d_in -> hid
        _segment(_block_diag(w2e0, w2e1), LANE),        # enc L2: hid  -> hid
        _segment(_block_diag(w3e0, w3e1), LANE),        # enc L3: hid  -> 2*o_dim (x1)
        _segment(_block_diag(w1d1, w1d0), LANE),        # dec L1: x1   -> hid   (dec1|dec0)
        _segment(_block_diag(w2d1, w2d0), LANE),        # dec L2: hid  -> hid
        _segment(_block_diag(w3d1, w3d0), LANE),        # dec L3: hid  -> [y1|y0]
    ], axis=0)                                          # (r1 + 5*128, 128)

    b_slab = jnp.stack([
        _bias_row(b1e0, b1e1), _bias_row(b2e0, b2e1), _bias_row(b3e0, b3e1),
        _bias_row(b1d1, b1d0), _bias_row(b2d1, b2d0), _bias_row(b3d1, b3d0),
    ], axis=0)                                          # (6, 128)
    return w_slab, b_slab


# ---------------------------------------------------------------------------
# CEModel forward (dataset != 1 branch) — jitted wrapper around one pallas_call.
# ---------------------------------------------------------------------------
@functools.partial(jax.jit, static_argnames=("i_shape", "o_dim"))
def ce_model_forward(x, w_slab, b_slab, *, i_shape, o_dim):
    i0, i1 = i_shape
    d_in = i0 + i1
    r1 = _round_up(d_in, SUBLANE)
    B = x.shape[0]
    tile_b = min(MAX_TILE_B, _round_up(B, SUBLANE))
    b_pad = _round_up(B, tile_b)
    xin = x[:, :d_in]
    if b_pad != B:
        # batch-row pad only (no lane pad: first matmul keeps K = d_in = 32);
        # padded rows carry bias garbage and are sliced off below.
        xin = jnp.pad(xin, ((0, b_pad - B), (0, 0)))
    o = _ce_fused_call(xin, w_slab, b_slab, d_in=d_in, r1=r1, tile_b=tile_b)
    # TODO(synk): at large B these four narrow-lane slices each cost a masked HBM copy;
    # downstream consumers (e.g. the reconstruction loss) should read the packed
    # (2, B, 128) slab directly or be fused into the kernel.
    x1_0 = o[0, :B, :o_dim]
    x1_1 = o[0, :B, o_dim:2 * o_dim]
    y1 = o[1, :B, :i1]                                  # dec_net1(x1_0)
    y0 = o[1, :B, i1:i1 + i0]                           # dec_net0(x1_1)
    return [[x1_0, x1_1], [y0, y1]]                     # z = [x1, y]


# ---------------------------------------------------------------------------
# Pure-JAX reference (uses the unpacked per-module params) for correctness check.
# ---------------------------------------------------------------------------
def _mlp3_ref(x, p):
    (w1, b1), (w2, b2), (w3, b3) = p
    h1 = jnp.maximum(x @ w1 + b1, 0.0)
    h2 = jnp.maximum(h1 @ w2 + b2, 0.0)
    return h2 @ w3 + b3


def _ce_ref(x, params, i_shape):
    i0, i1 = i_shape
    c0, c1 = x[:, :i0], x[:, i0:i0 + i1]
    x1_0 = _mlp3_ref(c0, params["enc0"])
    x1_1 = _mlp3_ref(c1, params["enc1"])
    return [[x1_0, x1_1],
            [_mlp3_ref(x1_1, params["dec0"]), _mlp3_ref(x1_0, params["dec1"])]]


if __name__ == "__main__":
    key = jax.random.PRNGKey(0)
    k_x, k_p = jax.random.split(key)

    i_shape = (16, 16)          # CEModel(i_shape=(16, 16), o_dim=8, dataset=0)
    o_dim = 8
    batch = 4

    x = jax.random.normal(k_x, (batch, sum(i_shape)), jnp.float32)
    params = make_ce_params(k_p, i_shape, o_dim)
    w_slab, b_slab = pack_ce_params(params, i_shape, o_dim)

    z = ce_model_forward(x, w_slab, b_slab, i_shape=i_shape, o_dim=o_dim)
    z = jax.block_until_ready(z)

    # silent correctness check against the pure-JAX reference
    z_ref = _ce_ref(x, params, i_shape)
    for a, b in zip(jax.tree_util.tree_leaves(z), jax.tree_util.tree_leaves(z_ref)):
        assert jnp.allclose(a, b, atol=1e-4, rtol=1e-4), float(jnp.abs(a - b).max())

    print("KERNEL_OK")
</pallas_src>

<mosaic_0001>
module attributes {stable_mosaic.version = 11 : i64} {
  func.func @_ce_fused_kernel(%arg0: i32, %arg1: memref<8x32xf32, #tpu.memory_space<vmem>>, %arg2: memref<672x128xf32, #tpu.memory_space<vmem>>, %arg3: memref<6x128xf32, #tpu.memory_space<vmem>>, %arg4: memref<2x8x128xf32, #tpu.memory_space<vmem>>) attributes {dimension_semantics = [#tpu.dimension_semantics<parallel>], iteration_bounds = array<i64: 1>, scalar_prefetch = 0 : i64, scratch_operands = 0 : i64, tpu.core_type = #tpu.core_type<tc>, window_params = [{transform_indices = @transform_0, window_bounds = array<i64: 8, 32>}, {pipeline_mode = #tpu.pipeline_mode<synchronous>, transform_indices = @transform_1, window_bounds = array<i64: 672, 128>}, {pipeline_mode = #tpu.pipeline_mode<synchronous>, transform_indices = @transform_2, window_bounds = array<i64: 6, 128>}, {transform_indices = @transform_3, window_bounds = array<i64: 2, 8, 128>}]} {
    %c0 = arith.constant 0 : index
    %c0_0 = arith.constant 0 : index
    %0 = vector.load %arg1[%c0, %c0_0] : memref<8x32xf32, #tpu.memory_space<vmem>>, vector<8x32xf32>
    %c0_1 = arith.constant 0 : index
    %c0_2 = arith.constant 0 : index
    %1 = vector.load %arg2[%c0_1, %c0_2] : memref<672x128xf32, #tpu.memory_space<vmem>>, vector<32x128xf32>
    %c0_3 = arith.constant 0 : index
    %c0_4 = arith.constant 0 : index
    %2 = vector.load %arg3[%c0_3, %c0_4] : memref<6x128xf32, #tpu.memory_space<vmem>>, vector<1x128xf32>
    %3 = vector.shape_cast %2 : vector<1x128xf32> to vector<128xf32>
    %cst = arith.constant dense<0.000000e+00> : vector<8x128xf32>
    %4 = tpu.matmul %0, %1, %cst {dimension_numbers = #tpu.dot_dimension_numbers<[1], [0], [0], [1], [0, 0, 1, 1], [], []>} : vector<8x32xf32>, vector<32x128xf32>, vector<8x128xf32> -> vector<8x128xf32>
    %5 = vector.shape_cast %3 : vector<128xf32> to vector<1x128xf32>
    %6 = vector.broadcast %5 : vector<1x128xf32> to vector<8x128xf32>
    %7 = arith.addf %4, %6 : vector<8x128xf32>
    %cst_5 = arith.constant 0.000000e+00 : f32
    %8 = vector.broadcast %cst_5 : f32 to vector<8x128xf32>
    %9 = arith.maximumf %7, %8 : vector<8x128xf32>
    %c32 = arith.constant 32 : index
    %c0_6 = arith.constant 0 : index
    %10 = vector.load %arg2[%c32, %c0_6] : memref<672x128xf32, #tpu.memory_space<vmem>>, vector<128x128xf32>
    %c1 = arith.constant 1 : index
    %c0_7 = arith.constant 0 : index
    %11 = vector.load %arg3[%c1, %c0_7] : memref<6x128xf32, #tpu.memory_space<vmem>>, vector<1x128xf32>
    %12 = vector.shape_cast %11 : vector<1x128xf32> to vector<128xf32>
    %cst_8 = arith.constant dense<0.000000e+00> : vector<8x128xf32>
    %13 = tpu.matmul %9, %10, %cst_8 {dimension_numbers = #tpu.dot_dimension_numbers<[1], [0], [0], [1], [0, 0, 1, 1], [], []>} : vector<8x128xf32>, vector<128x128xf32>, vector<8x128xf32> -> vector<8x128xf32>
    %14 = vector.shape_cast %12 : vector<128xf32> to vector<1x128xf32>
    %15 = vector.broadcast %14 : vector<1x128xf32> to vector<8x128xf32>
    %16 = arith.addf %13, %15 : vector<8x128xf32>
    %cst_9 = arith.constant 0.000000e+00 : f32
    %17 = vector.broadcast %cst_9 : f32 to vector<8x128xf32>
    %18 = arith.maximumf %16, %17 : vector<8x128xf32>
    %c160 = arith.constant 160 : index
    %c0_10 = arith.constant 0 : index
    %19 = vector.load %arg2[%c160, %c0_10] : memref<672x128xf32, #tpu.memory_space<vmem>>, vector<128x128xf32>
    %c2 = arith.constant 2 : index
    %c0_11 = arith.constant 0 : index
    %20 = vector.load %arg3[%c2, %c0_11] : memref<6x128xf32, #tpu.memory_space<vmem>>, vector<1x128xf32>
    %21 = vector.shape_cast %20 : vector<1x128xf32> to vector<128xf32>
    %cst_12 = arith.constant dense<0.000000e+00> : vector<8x128xf32>
    %22 = tpu.matmul %18, %19, %cst_12 {dimension_numbers = #tpu.dot_dimension_numbers<[1], [0], [0], [1], [0, 0, 1, 1], [], []>} : vector<8x128xf32>, vector<128x128xf32>, vector<8x128xf32> -> vector<8x128xf32>
    %23 = vector.shape_cast %21 : vector<128xf32> to vector<1x128xf32>
    %24 = vector.broadcast %23 : vector<1x128xf32> to vector<8x128xf32>
    %25 = arith.addf %22, %24 : vector<8x128xf32>
    %c288 = arith.constant 288 : index
    %c0_13 = arith.constant 0 : index
    %26 = vector.load %arg2[%c288, %c0_13] : memref<672x128xf32, #tpu.memory_space<vmem>>, vector<128x128xf32>
    %c3 = arith.constant 3 : index
    %c0_14 = arith.constant 0 : index
    %27 = vector.load %arg3[%c3, %c0_14] : memref<6x128xf32, #tpu.memory_space<vmem>>, vector<1x128xf32>
    %28 = vector.shape_cast %27 : vector<1x128xf32> to vector<128xf32>
    %cst_15 = arith.constant dense<0.000000e+00> : vector<8x128xf32>
    %29 = tpu.matmul %25, %26, %cst_15 {dimension_numbers = #tpu.dot_dimension_numbers<[1], [0], [0], [1], [0, 0, 1, 1], [], []>} : vector<8x128xf32>, vector<128x128xf32>, vector<8x128xf32> -> vector<8x128xf32>
    %30 = vector.shape_cast %28 : vector<128xf32> to vector<1x128xf32>
    %31 = vector.broadcast %30 : vector<1x128xf32> to vector<8x128xf32>
    %32 = arith.addf %29, %31 : vector<8x128xf32>
    %cst_16 = arith.constant 0.000000e+00 : f32
    %33 = vector.broadcast %cst_16 : f32 to vector<8x128xf32>
    %34 = arith.maximumf %32, %33 : vector<8x128xf32>
    %c416 = arith.constant 416 : index
    %c0_17 = arith.constant 0 : index
    %35 = vector.load %arg2[%c416, %c0_17] : memref<672x128xf32, #tpu.memory_space<vmem>>, vector<128x128xf32>
    %c4 = arith.constant 4 : index
    %c0_18 = arith.constant 0 : index
    %36 = vector.load %arg3[%c4, %c0_18] : memref<6x128xf32, #tpu.memory_space<vmem>>, vector<1x128xf32>
    %37 = vector.shape_cast %36 : vector<1x128xf32> to vector<128xf32>
    %cst_19 = arith.constant dense<0.000000e+00> : vector<8x128xf32>
    %38 = tpu.matmul %34, %35, %cst_19 {dimension_numbers = #tpu.dot_dimension_numbers<[1], [0], [0], [1], [0, 0, 1, 1], [], []>} : vector<8x128xf32>, vector<128x128xf32>, vector<8x128xf32> -> vector<8x128xf32>
    %39 = vector.shape_cast %37 : vector<128xf32> to vector<1x128xf32>
    %40 = vector.broadcast %39 : vector<1x128xf32> to vector<8x128xf32>
    %41 = arith.addf %38, %40 : vector<8x128xf32>
    %cst_20 = arith.constant 0.000000e+00 : f32
    %42 = vector.broadcast %cst_20 : f32 to vector<8x128xf32>
    %43 = arith.maximumf %41, %42 : vector<8x128xf32>
    %c544 = arith.constant 544 : index
    %c0_21 = arith.constant 0 : index
    %44 = vector.load %arg2[%c544, %c0_21] : memref<672x128xf32, #tpu.memory_space<vmem>>, vector<128x128xf32>
    %c5 = arith.constant 5 : index
    %c0_22 = arith.constant 0 : index
    %45 = vector.load %arg3[%c5, %c0_22] : memref<6x128xf32, #tpu.memory_space<vmem>>, vector<1x128xf32>
    %46 = vector.shape_cast %45 : vector<1x128xf32> to vector<128xf32>
    %cst_23 = arith.constant dense<0.000000e+00> : vector<8x128xf32>
    %47 = tpu.matmul %43, %44, %cst_23 {dimension_numbers = #tpu.dot_dimension_numbers<[1], [0], [0], [1], [0, 0, 1, 1], [], []>} : vector<8x128xf32>, vector<128x128xf32>, vector<8x128xf32> -> vector<8x128xf32>
    %48 = vector.shape_cast %46 : vector<128xf32> to vector<1x128xf32>
    %49 = vector.broadcast %48 : vector<1x128xf32> to vector<8x128xf32>
    %50 = arith.addf %47, %49 : vector<8x128xf32>
    %c0_24 = arith.constant 0 : index
    %c0_25 = arith.constant 0 : index
    %c0_26 = arith.constant 0 : index
    %51 = vector.load %arg4[%c0_24, %c0_25, %c0_26] : memref<2x8x128xf32, #tpu.memory_space<vmem>>, vector<1x8x128xf32>
    %52 = vector.shape_cast %51 : vector<1x8x128xf32> to vector<8x128xf32>
    %53 = vector.shape_cast %25 : vector<8x128xf32> to vector<1x8x128xf32>
    tpu.vector_store %arg4[%c0_24, %c0_25, %c0_26], %53 {strides = array<i32>} : memref<2x8x128xf32, #tpu.memory_space<vmem>>, vector<1x8x128xf32>,
    %c1_27 = arith.constant 1 : index
    %c0_28 = arith.constant 0 : index
    %c0_29 = arith.constant 0 : index
    %54 = vector.load %arg4[%c1_27, %c0_28, %c0_29] : memref<2x8x128xf32, #tpu.memory_space<vmem>>, vector<1x8x128xf32>
    %55 = vector.shape_cast %54 : vector<1x8x128xf32> to vector<8x128xf32>
    %56 = vector.shape_cast %50 : vector<8x128xf32> to vector<1x8x128xf32>
    tpu.vector_store %arg4[%c1_27, %c0_28, %c0_29], %56 {strides = array<i32>} : memref<2x8x128xf32, #tpu.memory_space<vmem>>, vector<1x8x128xf32>,
    return
  }
  func.func @transform_0(%arg0: i32) -> (i32, i32) {
    %c0_i32 = arith.constant 0 : i32
    %c0_i32_0 = arith.constant 0 : i32
    return %arg0, %c0_i32 : i32, i32
  }
  func.func @transform_1(%arg0: i32) -> (i32, i32) {
    %c0_i32 = arith.constant 0 : i32
    %c0_i32_0 = arith.constant 0 : i32
    %c0_i32_1 = arith.constant 0 : i32
    return %c0_i32, %c0_i32_0 : i32, i32
  }
  func.func @transform_2(%arg0: i32) -> (i32, i32) {
    %c0_i32 = arith.constant 0 : i32
    %c0_i32_0 = arith.constant 0 : i32
    %c0_i32_1 = arith.constant 0 : i32
    return %c0_i32, %c0_i32_0 : i32, i32
  }
  func.func @transform_3(%arg0: i32) -> (i32, i32, i32) {
    %c0_i32 = arith.constant 0 : i32
    %c0_i32_0 = arith.constant 0 : i32
    %c0_i32_1 = arith.constant 0 : i32
    return %c0_i32, %arg0, %c0_i32_0 : i32, i32, i32
  }
}

</mosaic_0001>

<llo_original>
// kernel: ce_model_forward.1
$region0: #{ce_model_forward.1}
  #allocation0 [shape = 'u32[]', space=smem, size = 0x4, offset = 0x4, fixed_abs, tag = 'smem constant byte address 0x4 - core index']
  #allocation1 [shape = 'u32[144,128]{1,0:T(1,128)}', space=vmem, size = 0x12000, scoped, tag = 'internal scratch']
  %s0 = inlined_call_operand.vmem [shape: f32[8,32], index: 0, kind: input, shape index: {}]
  %s1 = inlined_call_operand.hbm [shape: f32[672,128], index: 1, kind: input, shape index: {}]
  %s2 = inlined_call_operand.vmem [shape: f32[6,128], index: 2, kind: input, shape index: {}]
  %s3 = inlined_call_operand.vmem [shape: f32[2,8,128], index: 3, kind: output, shape index: {}]
  %s4 = sld [smem:[#allocation0]]
  $region26: #{ce_model_forward.1} parent=0
    _
  %s6 = ssub.s32 1, %s4
  %s7 = scalar_select 0, %s6, %s4
  $region1: #{ce_model_forward.1} parent=0
    #allocation2 [shape = 'u8[344064]{0}', space=vmem, size = 0x54000, scoped, tag = 'input window, operand 1, single buffered']
    #allocation3 [shape = 's32[1]{0}', space=sflag, size = 0x4, scoped, tag = 'scoped memory for ce_model_forward.1']
    %8 = vsyncpa [#allocation3], 0
    // Predicated region
    $region2: #{ce_model_forward.1} parent=1 // pred_check
      _
    $region3: #{ce_model_forward.1} parent=1 // pred_check_branch
      %10 = sbr.rel (0) target = $region5
    $region4: #{ce_model_forward.1} parent=1 // pred_region
      _
    $region5: #{ce_model_forward.1} parent=1 // pred_fallthru
      _
    // Predicated region
    $region6: #{ce_model_forward.1} parent=1 // pred_check
      _
    $region7: #{ce_model_forward.1} parent=1 // pred_check_branch
      %12 = sbr.rel (0) target = $region9
    $region8: #{ce_model_forward.1} parent=1 // pred_region
      %s14 = ssub.s32 10752, 10752
      %15 = vsyncadd [#allocation3], %s14
      %s16 = sshll.u32 [#allocation2], 4
      %s17 = int_to_ptr.vmem [resolvable:$true] %s16
      %22 = dma.hbm_to_vmem [thread:$0]  %s1, 10752, %s17, [#allocation3], 128, 128, 8
    $region9: #{ce_model_forward.1} parent=1 // pred_fallthru
      _
    // Predicated region
    $region10: #{ce_model_forward.1} parent=1 // pred_check
      _
    $region11: #{ce_model_forward.1} parent=1 // pred_check_branch
      %24 = sbr.rel (0) target = $region13
    $region12: #{ce_model_forward.1} parent=1 // pred_region
      _
    $region13: #{ce_model_forward.1} parent=1 // pred_fallthru
      _
    // Predicated region
    $region14: #{ce_model_forward.1} parent=1 // pred_check
      _
    $region15: #{ce_model_forward.1} parent=1 // pred_check_branch
      %26 = sbr.rel (0) target = $region17
    $region16: #{ce_model_forward.1} parent=1 // pred_region
      %27 = dma.done [#allocation3], 10752
    $region17: #{ce_model_forward.1} parent=1 // pred_fallthru
      _
    %v28 = vld [vmem:[%s0] sm:$0xff]
    %v29 = vld [vmem:[#allocation2] sm:$0xff]
    %v30 = vld [vmem:[#allocation2 + $0x8] sm:$0xff]
    %v31 = vld [vmem:[#allocation2 + $0x10] sm:$0xff]
    %v32 = vld [vmem:[#allocation2 + $0x18] sm:$0xff]
    %v33 = vld [vmem:[%s2] sm:$0x1]
    %v34 = vlaneseq
    %v35 = vshrl.u32 %v34, 7
    %v36 = vsub.s32 0, %v35
    %v37 = vrot.slane %v33, %v36
    %vm38 = vcmask 261120
    %v40 = vsel %vm38, %v28, 0
    %42 = vmatprep.subr.mxu0 0.0
    %43 = vmatpush1.msra.mxu0 0.0
    %44 = vmatprep.subr.mxu0 0.0
    %45 = vmatpush1.msra.mxu0 0.0
    %46 = vmatprep.subr.mxu0 0.0
    %47 = vmatpush1.msra.mxu0 0.0
    %48 = vmatprep.subr.mxu0 0.0
    %49 = vmatpush1.msra.mxu0 0.0
    %50 = vmatprep.subr.mxu0 0.0
    %51 = vmatpush1.msra.mxu0 0.0
    %52 = vmatprep.subr.mxu0 0.0
    %53 = vmatpush1.msra.mxu0 0.0
    %54 = vmatprep.subr.mxu0 0.0
    %55 = vmatpush1.msra.mxu0 0.0
    %56 = vmatprep.subr.mxu0 0.0
    %57 = vmatpush1.msra.mxu0 0.0
    %58 = vmatprep.subr.mxu0 0.0
    %59 = vmatpush1.msra.mxu0 0.0
    %60 = vmatprep.subr.mxu0 0.0
    %61 = vmatpush1.msra.mxu0 0.0
    %62 = vmatprep.subr.mxu0 0.0
    %63 = vmatpush1.msra.mxu0 0.0
    %64 = vmatprep.subr.mxu0 0.0
    %65 = vmatpush1.msra.mxu0 0.0
    %66 = vmatprep.subr.mxu0 0.0
    %67 = vmatpush1.msra.mxu0 %v32
    %68 = vmatprep.subr.mxu0 0.0
    %69 = vmatpush1.msra.mxu0 %v31
    %70 = vmatprep.subr.mxu0 0.0
    %71 = vmatpush1.msra.mxu0 %v30
    %72 = vmatprep.subr.mxu0 0.0
    %73 = vmatpush1.msra.mxu0 %v29
    %74 = vmatprep.subr.mxu0 0.0
    %75 = vmatpush2.msra.mxu0 0.0
    %76 = vmatprep.subr.mxu0 0.0
    %77 = vmatpush2.msra.mxu0 0.0
    %78 = vmatprep.subr.mxu0 0.0
    %79 = vmatpush2.msra.mxu0 0.0
    %80 = vmatprep.subr.mxu0 0.0
    %81 = vmatpush2.msra.mxu0 0.0
    %82 = vmatprep.subr.mxu0 0.0
    %83 = vmatpush2.msra.mxu0 0.0
    %84 = vmatprep.subr.mxu0 0.0
    %85 = vmatpush2.msra.mxu0 0.0
    %86 = vmatprep.subr.mxu0 0.0
    %87 = vmatpush2.msra.mxu0 0.0
    %88 = vmatprep.subr.mxu0 0.0
    %89 = vmatpush2.msra.mxu0 0.0
    %90 = vmatprep.subr.mxu0 0.0
    %91 = vmatpush2.msra.mxu0 0.0
    %92 = vmatprep.subr.mxu0 0.0
    %93 = vmatpush2.msra.mxu0 0.0
    %94 = vmatprep.subr.mxu0 0.0
    %95 = vmatpush2.msra.mxu0 0.0
    %96 = vmatprep.subr.mxu0 0.0
    %97 = vmatpush2.msra.mxu0 0.0
    %98 = vmatprep.subr.mxu0 0.0
    %99 = vmatpush2.msra.mxu0 0.0
    %100 = vmatprep.subr.mxu0 0.0
    %101 = vmatpush2.msra.mxu0 0.0
    %102 = vmatprep.subr.mxu0 0.0
    %103 = vmatpush2.msra.mxu0 0.0
    %104 = vmatprep.subr.mxu0 0.0
    %105 = vmatpush2.msra.mxu0 0.0
    %106 = vmatprep.mubr.f32.mxu0 0.0
    %107 = vmatmul.mubr.f32.gmra.mxu0 %v40
    %v108 = vpop.f32.mrf.mxu0
    %v109 = vadd.f32 %v37, %v108
    %v110 = vpop.f32.mrf.mxu0
    %111 = vdwg.mxu0
    %v112 = vmax.f32 %v109, 0.0
    %v113 = vld [vmem:[#allocation2 + $0x20] sm:$0xff]
    %v114 = vld [vmem:[#allocation2 + $0x28] sm:$0xff]
    %v115 = vld [vmem:[#allocation2 + $0x30] sm:$0xff]
    %v116 = vld [vmem:[#allocation2 + $0x38] sm:$0xff]
    %v117 = vld [vmem:[#allocation2 + $0x40] sm:$0xff]
    %v118 = vld [vmem:[#allocation2 + $0x48] sm:$0xff]
    %v119 = vld [vmem:[#allocation2 + $0x50] sm:$0xff]
    %v120 = vld [vmem:[#allocation2 + $0x58] sm:$0xff]
    %v121 = vld [vmem:[#allocation2 + $0x60] sm:$0xff]
    %v122 = vld [vmem:[#allocation2 + $0x68] sm:$0xff]
    %v123 = vld [vmem:[#allocation2 + $0x70] sm:$0xff]
    %v124 = vld [vmem:[#allocation2 + $0x78] sm:$0xff]
    %v125 = vld [vmem:[#allocation2 + $0x80] sm:$0xff]
    %v126 = vld [vmem:[#allocation2 + $0x88] sm:$0xff]
    %v127 = vld [vmem:[#allocation2 + $0x90] sm:$0xff]
    %v128 = vld [vmem:[#allocation2 + $0x98] sm:$0xff]
    %v129 = vld [vmem:[%s2 + $0x1] sm:$0x1]
    %v130 = vlaneseq
    %v131 = vshrl.u32 %v130, 7
    %v132 = vsub.s32 0, %v131
    %v133 = vrot.slane %v129, %v132
    %134 = vmatprep.subr.mxu0 0.0
    %135 = vmatpush1.msra.mxu0 %v128
    %136 = vmatprep.subr.mxu0 0.0
    %137 = vmatpush1.msra.mxu0 %v127
    %138 = vmatprep.subr.mxu0 0.0
    %139 = vmatpush1.msra.mxu0 %v126
    %140 = vmatprep.subr.mxu0 0.0
    %141 = vmatpush1.msra.mxu0 %v125
    %142 = vmatprep.subr.mxu0 0.0
    %143 = vmatpush1.msra.mxu0 %v124
    %144 = vmatprep.subr.mxu0 0.0
    %145 = vmatpush1.msra.mxu0 %v123
    %146 = vmatprep.subr.mxu0 0.0
    %147 = vmatpush1.msra.mxu0 %v122
    %148 = vmatprep.subr.mxu0 0.0
    %149 = vmatpush1.msra.mxu0 %v121
    %150 = vmatprep.subr.mxu0 0.0
    %151 = vmatpush1.msra.mxu0 %v120
    %152 = vmatprep.subr.mxu0 0.0
    %153 = vmatpush1.msra.mxu0 %v119
    %154 = vmatprep.subr.mxu0 0.0
    %155 = vmatpush1.msra.mxu0 %v118
    %156 = vmatprep.subr.mxu0 0.0
    %157 = vmatpush1.msra.mxu0 %v117
    %158 = vmatprep.subr.mxu0 0.0
    %159 = vmatpush1.msra.mxu0 %v116
    %160 = vmatprep.subr.mxu0 0.0
    %161 = vmatpush1.msra.mxu0 %v115
    %162 = vmatprep.subr.mxu0 0.0
    %163 = vmatpush1.msra.mxu0 %v114
    %164 = vmatprep.subr.mxu0 0.0
    %165 = vmatpush1.msra.mxu0 %v113
    %166 = vmatprep.subr.mxu0 0.0
    %167 = vmatpush2.msra.mxu0 0.0
    %168 = vmatprep.subr.mxu0 0.0
    %169 = vmatpush2.msra.mxu0 0.0
    %170 = vmatprep.subr.mxu0 0.0
    %171 = vmatpush2.msra.mxu0 0.0
    %172 = vmatprep.subr.mxu0 0.0
    %173 = vmatpush2.msra.mxu0 0.0
    %174 = vmatprep.subr.mxu0 0.0
    %175 = vmatpush2.msra.mxu0 0.0
    %176 = vmatprep.subr.mxu0 0.0
    %177 = vmatpush2.msra.mxu0 0.0
    %178 = vmatprep.subr.mxu0 0.0
    %179 = vmatpush2.msra.mxu0 0.0
    %180 = vmatprep.subr.mxu0 0.0
    %181 = vmatpush2.msra.mxu0 0.0
    %182 = vmatprep.subr.mxu0 0.0
    %183 = vmatpush2.msra.mxu0 0.0
    %184 = vmatprep.subr.mxu0 0.0
    %185 = vmatpush2.msra.mxu0 0.0
    %186 = vmatprep.subr.mxu0 0.0
    %187 = vmatpush2.msra.mxu0 0.0
    %188 = vmatprep.subr.mxu0 0.0
    %189 = vmatpush2.msra.mxu0 0.0
    %190 = vmatprep.subr.mxu0 0.0
    %191 = vmatpush2.msra.mxu0 0.0
    %192 = vmatprep.subr.mxu0 0.0
    %193 = vmatpush2.msra.mxu0 0.0
    %194 = vmatprep.subr.mxu0 0.0
    %195 = vmatpush2.msra.mxu0 0.0
    %196 = vmatprep.subr.mxu0 0.0
    %197 = vmatpush2.msra.mxu0 0.0
    %198 = vmatprep.mubr.f32.mxu0 0.0
    %199 = vmatmul.mubr.f32.gmra.mxu0 %v112
    %v200 = vpop.f32.mrf.mxu0
    %v201 = vadd.f32 %v133, %v200
    %v202 = vpop.f32.mrf.mxu0
    %203 = vdwg.mxu0
    %v204 = vmax.f32 %v201, 0.0
    %v205 = vld [vmem:[#allocation2 + $0xa0] sm:$0xff]
    %v206 = vld [vmem:[#allocation2 + $0xa8] sm:$0xff]
    %v207 = vld [vmem:[#allocation2 + $0xb0] sm:$0xff]
    %v208 = vld [vmem:[#allocation2 + $0xb8] sm:$0xff]
    %v209 = vld [vmem:[#allocation2 + $0xc0] sm:$0xff]
    %v210 = vld [vmem:[#allocation2 + $0xc8] sm:$0xff]
    %v211 = vld [vmem:[#allocation2 + $0xd0] sm:$0xff]
    %v212 = vld [vmem:[#allocation2 + $0xd8] sm:$0xff]
    %v213 = vld [vmem:[#allocation2 + $0xe0] sm:$0xff]
    %v214 = vld [vmem:[#allocation2 + $0xe8] sm:$0xff]
    %v215 = vld [vmem:[#allocation2 + $0xf0] sm:$0xff]
    %v216 = vld [vmem:[#allocation2 + $0xf8] sm:$0xff]
    %v217 = vld [vmem:[#allocation2 + $0x100] sm:$0xff]
    %v218 = vld [vmem:[#allocation2 + $0x108] sm:$0xff]
    %v219 = vld [vmem:[#allocation2 + $0x110] sm:$0xff]
    %v220 = vld [vmem:[#allocation2 + $0x118] sm:$0xff]
    %v221 = vld [vmem:[%s2 + $0x2] sm:$0x1]
    %v222 = vlaneseq
    %v223 = vshrl.u32 %v222, 7
    %v224 = vsub.s32 0, %v223
    %v225 = vrot.slane %v221, %v224
    %226 = vmatprep.subr.mxu0 0.0
    %227 = vmatpush1.msra.mxu0 %v220
    %228 = vmatprep.subr.mxu0 0.0
    %229 = vmatpush1.msra.mxu0 %v219
    %230 = vmatprep.subr.mxu0 0.0
    %231 = vmatpush1.msra.mxu0 %v218
    %232 = vmatprep.subr.mxu0 0.0
    %233 = vmatpush1.msra.mxu0 %v217
    %234 = vmatprep.subr.mxu0 0.0
    %235 = vmatpush1.msra.mxu0 %v216
    %236 = vmatprep.subr.mxu0 0.0
    %237 = vmatpush1.msra.mxu0 %v215
    %238 = vmatprep.subr.mxu0 0.0
    %239 = vmatpush1.msra.mxu0 %v214
    %240 = vmatprep.subr.mxu0 0.0
    %241 = vmatpush1.msra.mxu0 %v213
    %242 = vmatprep.subr.mxu0 0.0
    %243 = vmatpush1.msra.mxu0 %v212
    %244 = vmatprep.subr.mxu0 0.0
    %245 = vmatpush1.msra.mxu0 %v211
    %246 = vmatprep.subr.mxu0 0.0
    %247 = vmatpush1.msra.mxu0 %v210
    %248 = vmatprep.subr.mxu0 0.0
    %249 = vmatpush1.msra.mxu0 %v209
    %250 = vmatprep.subr.mxu0 0.0
    %251 = vmatpush1.msra.mxu0 %v208
    %252 = vmatprep.subr.mxu0 0.0
    %253 = vmatpush1.msra.mxu0 %v207
    %254 = vmatprep.subr.mxu0 0.0
    %255 = vmatpush1.msra.mxu0 %v206
    %256 = vmatprep.subr.mxu0 0.0
    %257 = vmatpush1.msra.mxu0 %v205
    %258 = vmatprep.subr.mxu0 0.0
    %259 = vmatpush2.msra.mxu0 0.0
    %260 = vmatprep.subr.mxu0 0.0
    %261 = vmatpush2.msra.mxu0 0.0
    %262 = vmatprep.subr.mxu0 0.0
    %263 = vmatpush2.msra.mxu0 0.0
    %264 = vmatprep.subr.mxu0 0.0
    %265 = vmatpush2.msra.mxu0 0.0
    %266 = vmatprep.subr.mxu0 0.0
    %267 = vmatpush2.msra.mxu0 0.0
    %268 = vmatprep.subr.mxu0 0.0
    %269 = vmatpush2.msra.mxu0 0.0
    %270 = vmatprep.subr.mxu0 0.0
    %271 = vmatpush2.msra.mxu0 0.0
    %272 = vmatprep.subr.mxu0 0.0
    %273 = vmatpush2.msra.mxu0 0.0
    %274 = vmatprep.subr.mxu0 0.0
    %275 = vmatpush2.msra.mxu0 0.0
    %276 = vmatprep.subr.mxu0 0.0
    %277 = vmatpush2.msra.mxu0 0.0
    %278 = vmatprep.subr.mxu0 0.0
    %279 = vmatpush2.msra.mxu0 0.0
    %280 = vmatprep.subr.mxu0 0.0
    %281 = vmatpush2.msra.mxu0 0.0
    %282 = vmatprep.subr.mxu0 0.0
    %283 = vmatpush2.msra.mxu0 0.0
    %284 = vmatprep.subr.mxu0 0.0
    %285 = vmatpush2.msra.mxu0 0.0
    %286 = vmatprep.subr.mxu0 0.0
    %287 = vmatpush2.msra.mxu0 0.0
    %288 = vmatprep.subr.mxu0 0.0
    %289 = vmatpush2.msra.mxu0 0.0
    %290 = vmatprep.mubr.f32.mxu0 0.0
    %291 = vmatmul.mubr.f32.gmra.mxu0 %v204
    %v292 = vpop.f32.mrf.mxu0
    %v293 = vadd.f32 %v225, %v292
    %v294 = vpop.f32.mrf.mxu0
    %295 = vdwg.mxu0
    %v296 = vld [vmem:[#allocation2 + $0x120] sm:$0xff]
    %v297 = vld [vmem:[#allocation2 + $0x128] sm:$0xff]
    %v298 = vld [vmem:[#allocation2 + $0x130] sm:$0xff]
    %v299 = vld [vmem:[#allocation2 + $0x138] sm:$0xff]
    %v300 = vld [vmem:[#allocation2 + $0x140] sm:$0xff]
    %v301 = vld [vmem:[#allocation2 + $0x148] sm:$0xff]
    %v302 = vld [vmem:[#allocation2 + $0x150] sm:$0xff]
    %v303 = vld [vmem:[#allocation2 + $0x158] sm:$0xff]
    %v304 = vld [vmem:[#allocation2 + $0x160] sm:$0xff]
    %v305 = vld [vmem:[#allocation2 + $0x168] sm:$0xff]
    %v306 = vld [vmem:[#allocation2 + $0x170] sm:$0xff]
    %v307 = vld [vmem:[#allocation2 + $0x178] sm:$0xff]
    %v308 = vld [vmem:[#allocation2 + $0x180] sm:$0xff]
    %v309 = vld [vmem:[#allocation2 + $0x188] sm:$0xff]
    %v310 = vld [vmem:[#allocation2 + $0x190] sm:$0xff]
    %v311 = vld [vmem:[#allocation2 + $0x198] sm:$0xff]
    %v312 = vld [vmem:[%s2 + $0x3] sm:$0x1]
    %v313 = vlaneseq
    %v314 = vshrl.u32 %v313, 7
    %v315 = vsub.s32 0, %v314
    %v316 = vrot.slane %v312, %v315
    %317 = vmatprep.subr.mxu0 0.0
    %318 = vmatpush1.msra.mxu0 %v311
    %319 = vmatprep.subr.mxu0 0.0
    %320 = vmatpush1.msra.mxu0 %v310
    %321 = vmatprep.subr.mxu0 0.0
    %322 = vmatpush1.msra.mxu0 %v309
    %323 = vmatprep.subr.mxu0 0.0
    %324 = vmatpush1.msra.mxu0 %v308
    %325 = vmatprep.subr.mxu0 0.0
    %326 = vmatpush1.msra.mxu0 %v307
    %327 = vmatprep.subr.mxu0 0.0
    %328 = vmatpush1.msra.mxu0 %v306
    %329 = vmatprep.subr.mxu0 0.0
    %330 = vmatpush1.msra.mxu0 %v305
    %331 = vmatprep.subr.mxu0 0.0
    %332 = vmatpush1.msra.mxu0 %v304
    %333 = vmatprep.subr.mxu0 0.0
    %334 = vmatpush1.msra.mxu0 %v303
    %335 = vmatprep.subr.mxu0 0.0
    %336 = vmatpush1.msra.mxu0 %v302
    %337 = vmatprep.subr.mxu0 0.0
    %338 = vmatpush1.msra.mxu0 %v301
    %339 = vmatprep.subr.mxu0 0.0
    %340 = vmatpush1.msra.mxu0 %v300
    %341 = vmatprep.subr.mxu0 0.0
    %342 = vmatpush1.msra.mxu0 %v299
    %343 = vmatprep.subr.mxu0 0.0
    %344 = vmatpush1.msra.mxu0 %v298
    %345 = vmatprep.subr.mxu0 0.0
    %346 = vmatpush1.msra.mxu0 %v297
    %347 = vmatprep.subr.mxu0 0.0
    %348 = vmatpush1.msra.mxu0 %v296
    %349 = vmatprep.subr.mxu0 0.0
    %350 = vmatpush2.msra.mxu0 0.0
    %351 = vmatprep.subr.mxu0 0.0
    %352 = vmatpush2.msra.mxu0 0.0
    %353 = vmatprep.subr.mxu0 0.0
    %354 = vmatpush2.msra.mxu0 0.0
    %355 = vmatprep.subr.mxu0 0.0
    %356 = vmatpush2.msra.mxu0 0.0
    %357 = vmatprep.subr.mxu0 0.0
    %358 = vmatpush2.msra.mxu0 0.0
    %359 = vmatprep.subr.mxu0 0.0
    %360 = vmatpush2.msra.mxu0 0.0
    %361 = vmatprep.subr.mxu0 0.0
    %362 = vmatpush2.msra.mxu0 0.0
    %363 = vmatprep.subr.mxu0 0.0
    %364 = vmatpush2.msra.mxu0 0.0
    %365 = vmatprep.subr.mxu0 0.0
    %366 = vmatpush2.msra.mxu0 0.0
    %367 = vmatprep.subr.mxu0 0.0
    %368 = vmatpush2.msra.mxu0 0.0
    %369 = vmatprep.subr.mxu0 0.0
    %370 = vmatpush2.msra.mxu0 0.0
    %371 = vmatprep.subr.mxu0 0.0
    %372 = vmatpush2.msra.mxu0 0.0
    %373 = vmatprep.subr.mxu0 0.0
    %374 = vmatpush2.msra.mxu0 0.0
    %375 = vmatprep.subr.mxu0 0.0
    %376 = vmatpush2.msra.mxu0 0.0
    %377 = vmatprep.subr.mxu0 0.0
    %378 = vmatpush2.msra.mxu0 0.0
    %379 = vmatprep.subr.mxu0 0.0
    %380 = vmatpush2.msra.mxu0 0.0
    %381 = vmatprep.mubr.f32.mxu0 0.0
    %382 = vmatmul.mubr.f32.gmra.mxu0 %v293
    %v383 = vpop.f32.mrf.mxu0
    %v384 = vadd.f32 %v316, %v383
    %v385 = vpop.f32.mrf.mxu0
    %386 = vdwg.mxu0
    %v387 = vmax.f32 %v384, 0.0
    %v388 = vld [vmem:[#allocation2 + $0x1a0] sm:$0xff]
    %v389 = vld [vmem:[#allocation2 + $0x1a8] sm:$0xff]
    %v390 = vld [vmem:[#allocation2 + $0x1b0] sm:$0xff]
    %v391 = vld [vmem:[#allocation2 + $0x1b8] sm:$0xff]
    %v392 = vld [vmem:[#allocation2 + $0x1c0] sm:$0xff]
    %v393 = vld [vmem:[#allocation2 + $0x1c8] sm:$0xff]
    %v394 = vld [vmem:[#allocation2 + $0x1d0] sm:$0xff]
    %v395 = vld [vmem:[#allocation2 + $0x1d8] sm:$0xff]
    %v396 = vld [vmem:[#allocation2 + $0x1e0] sm:$0xff]
    %v397 = vld [vmem:[#allocation2 + $0x1e8] sm:$0xff]
    %v398 = vld [vmem:[#allocation2 + $0x1f0] sm:$0xff]
    %v399 = vld [vmem:[#allocation2 + $0x1f8] sm:$0xff]
    %v400 = vld [vmem:[#allocation2 + $0x200] sm:$0xff]
    %v401 = vld [vmem:[#allocation2 + $0x208] sm:$0xff]
    %v402 = vld [vmem:[#allocation2 + $0x210] sm:$0xff]
    %v403 = vld [vmem:[#allocation2 + $0x218] sm:$0xff]
    %v404 = vld [vmem:[%s2 + $0x4] sm:$0x1]
    %v405 = vlaneseq
    %v406 = vshrl.u32 %v405, 7
    %v407 = vsub.s32 0, %v406
    %v408 = vrot.slane %v404, %v407
    %409 = vmatprep.subr.mxu0 0.0
    %410 = vmatpush1.msra.mxu0 %v403
    %411 = vmatprep.subr.mxu0 0.0
    %412 = vmatpush1.msra.mxu0 %v402
    %413 = vmatprep.subr.mxu0 0.0
    %414 = vmatpush1.msra.mxu0 %v401
    %415 = vmatprep.subr.mxu0 0.0
    %416 = vmatpush1.msra.mxu0 %v400
    %417 = vmatprep.subr.mxu0 0.0
    %418 = vmatpush1.msra.mxu0 %v399
    %419 = vmatprep.subr.mxu0 0.0
    %420 = vmatpush1.msra.mxu0 %v398
    %421 = vmatprep.subr.mxu0 0.0
    %422 = vmatpush1.msra.mxu0 %v397
    %423 = vmatprep.subr.mxu0 0.0
    %424 = vmatpush1.msra.mxu0 %v396
    %425 = vmatprep.subr.mxu0 0.0
    %426 = vmatpush1.msra.mxu0 %v395
    %427 = vmatprep.subr.mxu0 0.0
    %428 = vmatpush1.msra.mxu0 %v394
    %429 = vmatprep.subr.mxu0 0.0
    %430 = vmatpush1.msra.mxu0 %v393
    %431 = vmatprep.subr.mxu0 0.0
    %432 = vmatpush1.msra.mxu0 %v392
    %433 = vmatprep.subr.mxu0 0.0
    %434 = vmatpush1.msra.mxu0 %v391
    %435 = vmatprep.subr.mxu0 0.0
    %436 = vmatpush1.msra.mxu0 %v390
    %437 = vmatprep.subr.mxu0 0.0
    %438 = vmatpush1.msra.mxu0 %v389
    %439 = vmatprep.subr.mxu0 0.0
    %440 = vmatpush1.msra.mxu0 %v388
    %441 = vmatprep.subr.mxu0 0.0
    %442 = vmatpush2.msra.mxu0 0.0
    %443 = vmatprep.subr.mxu0 0.0
    %444 = vmatpush2.msra.mxu0 0.0
    %445 = vmatprep.subr.mxu0 0.0
    %446 = vmatpush2.msra.mxu0 0.0
    %447 = vmatprep.subr.mxu0 0.0
    %448 = vmatpush2.msra.mxu0 0.0
    %449 = vmatprep.subr.mxu0 0.0
    %450 = vmatpush2.msra.mxu0 0.0
    %451 = vmatprep.subr.mxu0 0.0
    %452 = vmatpush2.msra.mxu0 0.0
    %453 = vmatprep.subr.mxu0 0.0
    %454 = vmatpush2.msra.mxu0 0.0
    %455 = vmatprep.subr.mxu0 0.0
    %456 = vmatpush2.msra.mxu0 0.0
    %457 = vmatprep.subr.mxu0 0.0
    %458 = vmatpush2.msra.mxu0 0.0
    %459 = vmatprep.subr.mxu0 0.0
    %460 = vmatpush2.msra.mxu0 0.0
    %461 = vmatprep.subr.mxu0 0.0
    %462 = vmatpush2.msra.mxu0 0.0
    %463 = vmatprep.subr.mxu0 0.0
    %464 = vmatpush2.msra.mxu0 0.0
    %465 = vmatprep.subr.mxu0 0.0
    %466 = vmatpush2.msra.mxu0 0.0
    %467 = vmatprep.subr.mxu0 0.0
    %468 = vmatpush2.msra.mxu0 0.0
    %469 = vmatprep.subr.mxu0 0.0
    %470 = vmatpush2.msra.mxu0 0.0
    %471 = vmatprep.subr.mxu0 0.0
    %472 = vmatpush2.msra.mxu0 0.0
    %473 = vmatprep.mubr.f32.mxu0 0.0
    %474 = vmatmul.mubr.f32.gmra.mxu0 %v387
    %v475 = vpop.f32.mrf.mxu0
    %v476 = vadd.f32 %v408, %v475
    %v477 = vpop.f32.mrf.mxu0
    %478 = vdwg.mxu0
    %v479 = vmax.f32 %v476, 0.0
    %v480 = vld [vmem:[#allocation2 + $0x220] sm:$0xff]
    %v481 = vld [vmem:[#allocation2 + $0x228] sm:$0xff]
    %v482 = vld [vmem:[#allocation2 + $0x230] sm:$0xff]
    %v483 = vld [vmem:[#allocation2 + $0x238] sm:$0xff]
    %v484 = vld [vmem:[#allocation2 + $0x240] sm:$0xff]
    %v485 = vld [vmem:[#allocation2 + $0x248] sm:$0xff]
    %v486 = vld [vmem:[#allocation2 + $0x250] sm:$0xff]
    %v487 = vld [vmem:[#allocation2 + $0x258] sm:$0xff]
    %v488 = vld [vmem:[#allocation2 + $0x260] sm:$0xff]
    %v489 = vld [vmem:[#allocation2 + $0x268] sm:$0xff]
    %v490 = vld [vmem:[#allocation2 + $0x270] sm:$0xff]
    %v491 = vld [vmem:[#allocation2 + $0x278] sm:$0xff]
    %v492 = vld [vmem:[#allocation2 + $0x280] sm:$0xff]
    %v493 = vld [vmem:[#allocation2 + $0x288] sm:$0xff]
    %v494 = vld [vmem:[#allocation2 + $0x290] sm:$0xff]
    %v495 = vld [vmem:[#allocation2 + $0x298] sm:$0xff]
    %v496 = vld [vmem:[%s2 + $0x5] sm:$0x1]
    %v497 = vlaneseq
    %v498 = vshrl.u32 %v497, 7
    %v499 = vsub.s32 0, %v498
    %v500 = vrot.slane %v496, %v499
    %501 = vmatprep.subr.mxu0 0.0
    %502 = vmatpush1.msra.mxu0 %v495
    %503 = vmatprep.subr.mxu0 0.0
    %504 = vmatpush1.msra.mxu0 %v494
    %505 = vmatprep.subr.mxu0 0.0
    %506 = vmatpush1.msra.mxu0 %v493
    %507 = vmatprep.subr.mxu0 0.0
    %508 = vmatpush1.msra.mxu0 %v492
    %509 = vmatprep.subr.mxu0 0.0
    %510 = vmatpush1.msra.mxu0 %v491
    %511 = vmatprep.subr.mxu0 0.0
    %512 = vmatpush1.msra.mxu0 %v490
    %513 = vmatprep.subr.mxu0 0.0
    %514 = vmatpush1.msra.mxu0 %v489
    %515 = vmatprep.subr.mxu0 0.0
    %516 = vmatpush1.msra.mxu0 %v488
    %517 = vmatprep.subr.mxu0 0.0
    %518 = vmatpush1.msra.mxu0 %v487
    %519 = vmatprep.subr.mxu0 0.0
    %520 = vmatpush1.msra.mxu0 %v486
    %521 = vmatprep.subr.mxu0 0.0
    %522 = vmatpush1.msra.mxu0 %v485
    %523 = vmatprep.subr.mxu0 0.0
    %524 = vmatpush1.msra.mxu0 %v484
    %525 = vmatprep.subr.mxu0 0.0
    %526 = vmatpush1.msra.mxu0 %v483
    %527 = vmatprep.subr.mxu0 0.0
    %528 = vmatpush1.msra.mxu0 %v482
    %529 = vmatprep.subr.mxu0 0.0
    %530 = vmatpush1.msra.mxu0 %v481
    %531 = vmatprep.subr.mxu0 0.0
    %532 = vmatpush1.msra.mxu0 %v480
    %533 = vmatprep.subr.mxu0 0.0
    %534 = vmatpush2.msra.mxu0 0.0
    %535 = vmatprep.subr.mxu0 0.0
    %536 = vmatpush2.msra.mxu0 0.0
    %537 = vmatprep.subr.mxu0 0.0
    %538 = vmatpush2.msra.mxu0 0.0
    %539 = vmatprep.subr.mxu0 0.0
    %540 = vmatpush2.msra.mxu0 0.0
    %541 = vmatprep.subr.mxu0 0.0
    %542 = vmatpush2.msra.mxu0 0.0
    %543 = vmatprep.subr.mxu0 0.0
    %544 = vmatpush2.msra.mxu0 0.0
    %545 = vmatprep.subr.mxu0 0.0
    %546 = vmatpush2.msra.mxu0 0.0
    %547 = vmatprep.subr.mxu0 0.0
    %548 = vmatpush2.msra.mxu0 0.0
    %549 = vmatprep.subr.mxu0 0.0
    %550 = vmatpush2.msra.mxu0 0.0
    %551 = vmatprep.subr.mxu0 0.0
    %552 = vmatpush2.msra.mxu0 0.0
    %553 = vmatprep.subr.mxu0 0.0
    %554 = vmatpush2.msra.mxu0 0.0
    %555 = vmatprep.subr.mxu0 0.0
    %556 = vmatpush2.msra.mxu0 0.0
    %557 = vmatprep.subr.mxu0 0.0
    %558 = vmatpush2.msra.mxu0 0.0
    %559 = vmatprep.subr.mxu0 0.0
    %560 = vmatpush2.msra.mxu0 0.0
    %561 = vmatprep.subr.mxu0 0.0
    %562 = vmatpush2.msra.mxu0 0.0
    %563 = vmatprep.subr.mxu0 0.0
    %564 = vmatpush2.msra.mxu0 0.0
    %565 = vmatprep.mubr.f32.mxu0 0.0
    %566 = vmatmul.mubr.f32.gmra.mxu0 %v479
    %v567 = vpop.f32.mrf.mxu0
    %v568 = vadd.f32 %v500, %v567
    %v569 = vpop.f32.mrf.mxu0
    %570 = vdwg.mxu0
    %571 = vst [vmem:[%s3] sm:$0xff] %v293
    %s572 = scalar_lea.vmem %s3, 8
    %573 = vst [vmem:[%s572] sm:$0xff] %v568
    // Predicated region
    $region18: #{ce_model_forward.1} parent=1 // pred_check
      _
    $region19: #{ce_model_forward.1} parent=1 // pred_check_branch
      %575 = sbr.rel (0) target = $region21
    $region20: #{ce_model_forward.1} parent=1 // pred_region
      _
    $region21: #{ce_model_forward.1} parent=1 // pred_fallthru
      _
    // Predicated region
    $region22: #{ce_model_forward.1} parent=1 // pred_check
      _
    $region23: #{ce_model_forward.1} parent=1 // pred_check_branch
      %577 = sbr.rel (0) target = $region25
    $region24: #{ce_model_forward.1} parent=1 // pred_region
      _
    $region25: #{ce_model_forward.1} parent=1 // pred_fallthru
      _
    %578 = vsyncpa [#allocation3], 1

</llo_original>
